<compile_context>
chip_gen: v5e
topology: v5e:2x2
jax: 0.10.0
libtpu: 0.0.40
codegen_flags: <defaults>
</compile_context>

<pallas_src>
import functools
from typing import NamedTuple

import jax
import jax.numpy as jnp
from jax.experimental import pallas as pl
from jax.experimental.pallas import tpu as pltpu


def _round_up(a, b):
    return (a + b - 1) // b * b


def _vmem_capacity_bytes():
    try:
        return int(pltpu.get_tpu_info().vmem_capacity_bytes)
    except Exception:
        return 64 * 1024 * 1024  # conservative: v7x per-TC physical VMEM


class FFNParams(NamedTuple):
    """Pre-cast / pre-padded / pre-tiled FFN parameters (built once)."""
    w1: jax.Array   # (num_h, Dp, th)  bf16
    b1: jax.Array   # (num_h, 1,  th)  f32
    w2: jax.Array   # (num_h, th, Dp)  bf16
    b2: jax.Array   # (1, Dp)          f32


def prepare_params(w1, b1, w2, b2, *, block_h=512, compute_dtype=jnp.bfloat16):
    """Cast, zero-pad and H-tile the weights ONCE (hoisted out of the hot path).

    w1: (D, 4D), b1: (4D,) or (1,4D), w2: (4D, D), b2: (D,) or (1,D).
    Zero padding is mathematically exact: padded x columns hit zero W1 rows,
    padded hidden units are ReLU(0)=0 and hit zero W2 rows, padded output
    columns are sliced off in feed_forward().
    """
    D, H = w1.shape
    b1 = jnp.reshape(b1, (1, H))
    b2 = jnp.reshape(b2, (1, D))

    Dp = _round_up(D, 128)
    th = min(_round_up(block_h, 128), _round_up(H, 128))
    Hp = _round_up(H, th)
    num_h = Hp // th

    w1p = w1.astype(compute_dtype)
    w2p = w2.astype(compute_dtype)
    b1p = b1.astype(jnp.float32)
    b2p = b2.astype(jnp.float32)
    if (Dp, Hp) != (D, H):
        w1p = jnp.pad(w1p, ((0, Dp - D), (0, Hp - H)))
        w2p = jnp.pad(w2p, ((0, Hp - H), (0, Dp - D)))
        b1p = jnp.pad(b1p, ((0, 0), (0, Hp - H)))
        b2p = jnp.pad(b2p, ((0, 0), (0, Dp - D)))

    # Tile the hidden axis into a leading block axis so the kernel selects the
    # k-th hidden tile with a cheap leading-dim index on a resident VMEM ref.
    w1t = w1p.reshape(Dp, num_h, th).transpose(1, 0, 2)   # (num_h, Dp, th)
    b1t = b1p.reshape(num_h, 1, th)                       # (num_h, 1,  th)
    w2t = w2p.reshape(num_h, th, Dp)                      # (num_h, th, Dp)
    return FFNParams(w1t, b1t, w2t, b2p)


def _make_ffn_kernel(resident, use_acc):
    """Grid = (M tiles, H tiles).  H (axis 1) is the reduction axis."""

    def kernel(x_ref, w1_ref, b1_ref, w2_ref, b2_ref, o_ref, *scratch):
        k = pl.program_id(1)
        idx = k if resident else 0          # resident: full weights in VMEM
        w1 = w1_ref[idx]                    # (Dp, th) bf16
        b1 = b1_ref[idx]                    # (1,  th) f32
        w2 = w2_ref[idx]                    # (th, Dp) bf16

        # matmul 1 (bf16 x bf16 -> f32) + bias1 + ReLU for this hidden tile.
        h = jnp.dot(x_ref[...], w1, preferred_element_type=jnp.float32)
        h = jnp.maximum(h + b1, 0.0)
        # matmul 2: downcast only at the MXU input, accumulate in f32.
        part = jnp.dot(h.astype(w2.dtype), w2,
                       preferred_element_type=jnp.float32)

        if use_acc:
            acc_ref = scratch[0]

            @pl.when(k == 0)
            def _():
                acc_ref[...] = jnp.zeros_like(acc_ref)

            acc_ref[...] += part

            @pl.when(k == pl.num_programs(1) - 1)
            def _():
                o_ref[...] = (acc_ref[...] + b2_ref[...]).astype(o_ref.dtype)
        else:
            # f32 output: accumulate directly into the resident o_ref block,
            # folding bias2 into the first partial (no VMEM scratch needed).
            @pl.when(k == 0)
            def _():
                o_ref[...] = part + b2_ref[...]

            @pl.when(k != 0)
            def _():
                o_ref[...] += part

    return kernel


@functools.partial(jax.jit, static_argnames=("block_m", "force_streaming"))
def feed_forward(x, params: FFNParams, *, block_m=256, force_streaming=False):
    """x: (B, T, n_embd).  params: output of prepare_params().

    Returns (B, T, n_embd) in x.dtype.  Dropout is identity (inference mode).
    """
    B, T, D = x.shape
    num_h, Dp, th = params.w1.shape
    Hp = num_h * th
    M = B * T
    compute_dtype = params.w1.dtype
    out_dtype = x.dtype
    out_itemsize = jnp.dtype(out_dtype).itemsize
    use_acc = out_dtype != jnp.float32

    # --- M tiling: ensure >= 2 tiles when possible (v7x has 2 TCs to shard).
    Mp = _round_up(M, 8)
    tm = min(_round_up(block_m, 8), Mp)
    if Mp // tm < 2 and Mp >= 16:
        tm = _round_up(Mp // 2, 8)
    Mp = _round_up(M, tm)
    num_m = Mp // tm

    # --- VMEM budget & residency decision.
    vmem_budget = min(int(_vmem_capacity_bytes() * 0.75), 100 * 1024 * 1024)

    def vmem_estimate(res, tm_):
        if res:
            w_bytes = 2 * (2 * Dp * Hp * 2)              # W1+W2 bf16, x2 buffers
        else:
            w_bytes = 3 * (Dp * th + th * Dp) * 2        # Buffered(3) tiles
        x_bytes = 2 * tm_ * Dp * 2                       # double-buffered x tile
        o_bytes = 2 * tm_ * Dp * out_itemsize            # double-buffered out tile
        h_bytes = tm_ * th * (4 + 2)                     # f32 h + bf16 copy
        acc_bytes = tm_ * Dp * 4 if use_acc else 0
        bias_bytes = 2 * (Hp + Dp) * 4
        return w_bytes + x_bytes + o_bytes + h_bytes + acc_bytes + bias_bytes

    resident = (not force_streaming) and vmem_estimate(True, tm) <= vmem_budget
    if not resident:
        # Streaming weights: raise M-tile toward the HBM/MXU roofline
        # break-even (flops per streamed weight byte == tm).
        tm = _round_up(min(max(tm, 512), Mp), 8)
        Mp = _round_up(M, tm)
        num_m = Mp // tm

    needed = vmem_estimate(resident, tm)
    vmem_limit = max(32 * 1024 * 1024,
                     min(int(needed * 1.5) + 16 * 1024 * 1024, vmem_budget))

    # --- pad activations (per-call; skipped when already aligned).
    x2 = x.reshape(M, D).astype(compute_dtype)
    if (Mp, Dp) != (M, D):
        x2 = jnp.pad(x2, ((0, Mp - M), (0, Dp - D)))

    # --- BlockSpecs.
    if resident:
        w1_spec = pl.BlockSpec((num_h, Dp, th), lambda i, k: (0, 0, 0))
        b1_spec = pl.BlockSpec((num_h, 1, th), lambda i, k: (0, 0, 0))
        w2_spec = pl.BlockSpec((num_h, th, Dp), lambda i, k: (0, 0, 0))
    else:
        w1_spec = pl.BlockSpec((1, Dp, th), lambda i, k: (k, 0, 0),
                               pipeline_mode=pl.Buffered(3))
        b1_spec = pl.BlockSpec((1, 1, th), lambda i, k: (k, 0, 0))
        w2_spec = pl.BlockSpec((1, th, Dp), lambda i, k: (k, 0, 0),
                               pipeline_mode=pl.Buffered(3))

    scratch = [pltpu.VMEM((tm, Dp), jnp.float32)] if use_acc else []

    w_stream_factor = 1 if resident else num_m
    bytes_accessed = (Mp * Dp * 2                      # x (bf16)
                      + Mp * Dp * out_itemsize         # out
                      + w_stream_factor * 2 * Dp * Hp * 2
                      + (Hp + Dp) * 4)                 # biases
    cost = pl.CostEstimate(flops=4 * Mp * Dp * Hp, transcendentals=0,
                           bytes_accessed=bytes_accessed)

    out2 = pl.pallas_call(
        _make_ffn_kernel(resident, use_acc),
        out_shape=jax.ShapeDtypeStruct((Mp, Dp), out_dtype),
        grid_spec=pltpu.PrefetchScalarGridSpec(
            num_scalar_prefetch=0,
            grid=(num_m, num_h),
            in_specs=[
                pl.BlockSpec((tm, Dp), lambda i, k: (i, 0)),   # x rows tile
                w1_spec, b1_spec, w2_spec,
                pl.BlockSpec((1, Dp), lambda i, k: (0, 0)),    # b2 (resident)
            ],
            out_specs=pl.BlockSpec((tm, Dp), lambda i, k: (i, 0)),
            scratch_shapes=scratch,
        ),
        compiler_params=pltpu.CompilerParams(
            dimension_semantics=("parallel", "arbitrary"),
            vmem_limit_bytes=vmem_limit,
        ),
        cost_estimate=cost,
    )(x2, params.w1, params.b1, params.w2, params.b2)

    return out2[:M, :D].reshape(B, T, D)


def init_params(key, n_embd):
    """Deterministic init mimicking nn.Linear's uniform(-1/sqrt(fan_in), ...)."""
    hidden = 4 * n_embd
    k1, k2, k3, k4 = jax.random.split(key, 4)
    bound1 = 1.0 / jnp.sqrt(n_embd)
    bound2 = 1.0 / jnp.sqrt(hidden)
    # stored as (in, out) so the kernel does x @ W
    w1 = jax.random.uniform(k1, (n_embd, hidden), jnp.float32, -bound1, bound1)
    b1 = jax.random.uniform(k2, (1, hidden), jnp.float32, -bound1, bound1)
    w2 = jax.random.uniform(k3, (hidden, n_embd), jnp.float32, -bound2, bound2)
    b2 = jax.random.uniform(k4, (1, n_embd), jnp.float32, -bound2, bound2)
    return w1, b1, w2, b2


def feed_forward_ref(x, w1, b1, w2, b2):
    """Pure-JAX reference mimicking the kernel's bf16-input / f32-accum math."""
    cd = jnp.bfloat16
    h = jnp.dot(x.astype(cd), w1.astype(cd), preferred_element_type=jnp.float32)
    h = jnp.maximum(h + b1[0].astype(jnp.float32), 0.0)
    o = jnp.dot(h.astype(cd), w2.astype(cd), preferred_element_type=jnp.float32)
    return o + b2[0].astype(jnp.float32)


if __name__ == "__main__":
    B, T, n_embd = 2, 8, 32      # small shapes consistent with a GPT block
    key = jax.random.PRNGKey(0)
    kx, kp = jax.random.split(key)
    x = jax.random.normal(kx, (B, T, n_embd), jnp.float32)
    w1, b1, w2, b2 = init_params(kp, n_embd)

    params = prepare_params(w1, b1, w2, b2)        # one-time weight prep
    out = jax.block_until_ready(feed_forward(x, params))
    ref = feed_forward_ref(x, w1, b1, w2, b2)
    assert out.shape == (B, T, n_embd)
    assert out.dtype == x.dtype
    assert jnp.allclose(out, ref, atol=2e-2, rtol=2e-2), "mismatch (config 1)"

    # Second config with multiple hidden (k) tiles to exercise the in-place
    # o_ref accumulation across the reduction axis.
    n_embd2 = 64
    kx2, kp2 = jax.random.split(jax.random.PRNGKey(0))
    x2 = jax.random.normal(kx2, (B, T, n_embd2), jnp.float32)
    w1b, b1b, w2b, b2b = init_params(kp2, n_embd2)
    params2 = prepare_params(w1b, b1b, w2b, b2b, block_h=128)   # 2 hidden tiles
    out2 = jax.block_until_ready(feed_forward(x2, params2))
    ref2 = feed_forward_ref(x2, w1b, b1b, w2b, b2b)
    assert jnp.allclose(out2, ref2, atol=2e-2, rtol=2e-2), "mismatch (config 2)"

    print("KERNEL_OK")
</pallas_src>

<mosaic_0001>
module attributes {stable_mosaic.version = 11 : i64} {
  func.func @kernel(%arg0: i32, %arg1: i32, %arg2: memref<8x128xbf16, #tpu.memory_space<vmem>>, %arg3: memref<1x128x128xbf16, #tpu.memory_space<vmem>>, %arg4: memref<1x1x128xf32, #tpu.memory_space<vmem>>, %arg5: memref<1x128x128xbf16, #tpu.memory_space<vmem>>, %arg6: memref<1x128xf32, #tpu.memory_space<vmem>>, %arg7: memref<8x128xf32, #tpu.memory_space<vmem>>) attributes {dimension_semantics = [#tpu.dimension_semantics<parallel>, #tpu.dimension_semantics<arbitrary>], iteration_bounds = array<i64: 2, 1>, scalar_prefetch = 0 : i64, scratch_operands = 0 : i64, tpu.core_type = #tpu.core_type<tc>, window_params = [{transform_indices = @transform_0, window_bounds = array<i64: 8, 128>}, {pipeline_mode = #tpu.pipeline_mode<synchronous>, transform_indices = @transform_1, window_bounds = array<i64: 1, 128, 128>}, {pipeline_mode = #tpu.pipeline_mode<synchronous>, transform_indices = @transform_2, window_bounds = array<i64: 1, 1, 128>}, {pipeline_mode = #tpu.pipeline_mode<synchronous>, transform_indices = @transform_3, window_bounds = array<i64: 1, 128, 128>}, {pipeline_mode = #tpu.pipeline_mode<synchronous>, transform_indices = @transform_4, window_bounds = array<i64: 1, 128>}, {transform_indices = @transform_5, window_bounds = array<i64: 8, 128>}]} {
    %0 = arith.index_cast %arg1 : i32 to index
    %c0 = arith.constant 0 : index
    %c0_0 = arith.constant 0 : index
    %1 = vector.load %arg3[%0, %c0, %c0_0] : memref<1x128x128xbf16, #tpu.memory_space<vmem>>, vector<1x128x128xbf16>
    %2 = vector.shape_cast %1 : vector<1x128x128xbf16> to vector<128x128xbf16>
    %3 = arith.index_cast %arg1 : i32 to index
    %c0_1 = arith.constant 0 : index
    %c0_2 = arith.constant 0 : index
    %4 = vector.load %arg4[%3, %c0_1, %c0_2] : memref<1x1x128xf32, #tpu.memory_space<vmem>>, vector<1x1x128xf32>
    %5 = vector.shape_cast %4 : vector<1x1x128xf32> to vector<1x128xf32>
    %6 = arith.index_cast %arg1 : i32 to index
    %c0_3 = arith.constant 0 : index
    %c0_4 = arith.constant 0 : index
    %7 = vector.load %arg5[%6, %c0_3, %c0_4] : memref<1x128x128xbf16, #tpu.memory_space<vmem>>, vector<1x128x128xbf16>
    %8 = vector.shape_cast %7 : vector<1x128x128xbf16> to vector<128x128xbf16>
    %c0_5 = arith.constant 0 : index
    %c0_6 = arith.constant 0 : index
    %9 = vector.load %arg2[%c0_5, %c0_6] : memref<8x128xbf16, #tpu.memory_space<vmem>>, vector<8x128xbf16>
    %cst = arith.constant dense<0.000000e+00> : vector<8x128xf32>
    %10 = tpu.matmul %9, %2, %cst {dimension_numbers = #tpu.dot_dimension_numbers<[1], [0], [0], [1], [0, 0, 1, 1], [], []>} : vector<8x128xbf16>, vector<128x128xbf16>, vector<8x128xf32> -> vector<8x128xf32>
    %11 = vector.broadcast %5 : vector<1x128xf32> to vector<8x128xf32>
    %12 = arith.addf %10, %11 : vector<8x128xf32>
    %cst_7 = arith.constant 0.000000e+00 : f32
    %13 = vector.broadcast %cst_7 : f32 to vector<8x128xf32>
    %14 = arith.maximumf %12, %13 : vector<8x128xf32>
    %15 = arith.truncf %14 : vector<8x128xf32> to vector<8x128xbf16>
    %cst_8 = arith.constant dense<0.000000e+00> : vector<8x128xf32>
    %16 = tpu.matmul %15, %8, %cst_8 {dimension_numbers = #tpu.dot_dimension_numbers<[1], [0], [0], [1], [0, 0, 1, 1], [], []>} : vector<8x128xbf16>, vector<128x128xbf16>, vector<8x128xf32> -> vector<8x128xf32>
    %c0_i32 = arith.constant 0 : i32
    %17 = arith.cmpi eq, %arg1, %c0_i32 : i32
    %18 = arith.extui %17 : i1 to i32
    %c0_i32_9 = arith.constant 0 : i32
    %19 = arith.cmpi ne, %18, %c0_i32_9 : i32
    scf.if %19 {
      %c0_12 = arith.constant 0 : index
      %c0_13 = arith.constant 0 : index
      %23 = vector.load %arg6[%c0_12, %c0_13] : memref<1x128xf32, #tpu.memory_space<vmem>>, vector<1x128xf32>
      %24 = vector.broadcast %23 : vector<1x128xf32> to vector<8x128xf32>
      %25 = arith.addf %16, %24 : vector<8x128xf32>
      %c0_14 = arith.constant 0 : index
      %c0_15 = arith.constant 0 : index
      %26 = vector.load %arg7[%c0_14, %c0_15] : memref<8x128xf32, #tpu.memory_space<vmem>>, vector<8x128xf32>
      tpu.vector_store %arg7[%c0_14, %c0_15], %25 {strides = array<i32>} : memref<8x128xf32, #tpu.memory_space<vmem>>, vector<8x128xf32>,
    } else {
    }
    %c0_i32_10 = arith.constant 0 : i32
    %20 = arith.cmpi ne, %arg1, %c0_i32_10 : i32
    %21 = arith.extui %20 : i1 to i32
    %c0_i32_11 = arith.constant 0 : i32
    %22 = arith.cmpi ne, %21, %c0_i32_11 : i32
    scf.if %22 {
      %c0_12 = arith.constant 0 : index
      %c0_13 = arith.constant 0 : index
      %23 = vector.load %arg7[%c0_12, %c0_13] : memref<8x128xf32, #tpu.memory_space<vmem>>, vector<8x128xf32>
      %24 = arith.addf %23, %16 : vector<8x128xf32>
      %c0_14 = arith.constant 0 : index
      %c0_15 = arith.constant 0 : index
      %25 = vector.load %arg7[%c0_14, %c0_15] : memref<8x128xf32, #tpu.memory_space<vmem>>, vector<8x128xf32>
      tpu.vector_store %arg7[%c0_14, %c0_15], %24 {strides = array<i32>} : memref<8x128xf32, #tpu.memory_space<vmem>>, vector<8x128xf32>,
    } else {
    }
    return
  }
  func.func @transform_0(%arg0: i32, %arg1: i32) -> (i32, i32) {
    %c0_i32 = arith.constant 0 : i32
    %c0_i32_0 = arith.constant 0 : i32
    return %arg0, %c0_i32 : i32, i32
  }
  func.func @transform_1(%arg0: i32, %arg1: i32) -> (i32, i32, i32) {
    %c0_i32 = arith.constant 0 : i32
    %c0_i32_0 = arith.constant 0 : i32
    %c0_i32_1 = arith.constant 0 : i32
    %c0_i32_2 = arith.constant 0 : i32
    return %c0_i32, %c0_i32_0, %c0_i32_1 : i32, i32, i32
  }
  func.func @transform_2(%arg0: i32, %arg1: i32) -> (i32, i32, i32) {
    %c0_i32 = arith.constant 0 : i32
    %c0_i32_0 = arith.constant 0 : i32
    %c0_i32_1 = arith.constant 0 : i32
    %c0_i32_2 = arith.constant 0 : i32
    return %c0_i32, %c0_i32_0, %c0_i32_1 : i32, i32, i32
  }
  func.func @transform_3(%arg0: i32, %arg1: i32) -> (i32, i32, i32) {
    %c0_i32 = arith.constant 0 : i32
    %c0_i32_0 = arith.constant 0 : i32
    %c0_i32_1 = arith.constant 0 : i32
    %c0_i32_2 = arith.constant 0 : i32
    return %c0_i32, %c0_i32_0, %c0_i32_1 : i32, i32, i32
  }
  func.func @transform_4(%arg0: i32, %arg1: i32) -> (i32, i32) {
    %c0_i32 = arith.constant 0 : i32
    %c0_i32_0 = arith.constant 0 : i32
    %c0_i32_1 = arith.constant 0 : i32
    return %c0_i32, %c0_i32_0 : i32, i32
  }
  func.func @transform_5(%arg0: i32, %arg1: i32) -> (i32, i32) {
    %c0_i32 = arith.constant 0 : i32
    %c0_i32_0 = arith.constant 0 : i32
    return %arg0, %c0_i32 : i32, i32
  }
}

</mosaic_0001>

<llo_original>
// kernel: feed_forward.1
$region0: #{feed_forward.1}
  #allocation0 [shape = 'u32[]', space=smem, size = 0x4, offset = 0x4, fixed_abs, tag = 'smem constant byte address 0x4 - core index']
  #allocation1 [shape = 'u32[72,128]{1,0:T(1,128)}', space=vmem, size = 0x9000, scoped, tag = 'internal scratch']
  %s0 = inlined_call_operand.vmem [shape: bf16[16,128], index: 0, kind: input, shape index: {}]
  %s1 = inlined_call_operand.hbm [shape: bf16[1,128,128], index: 1, kind: input, shape index: {}]
  %s2 = inlined_call_operand.vmem [shape: f32[1,1,128], index: 2, kind: input, shape index: {}]
  %s3 = inlined_call_operand.hbm [shape: bf16[1,128,128], index: 3, kind: input, shape index: {}]
  %s4 = inlined_call_operand.vmem [shape: f32[1,128], index: 4, kind: input, shape index: {}]
  %s5 = inlined_call_operand.vmem [shape: f32[16,128], index: 5, kind: output, shape index: {}]
  %s6 = sld [smem:[#allocation0]]
  $region69: #{feed_forward.1} parent=0
    _
  %s8 = ssub.s32 1, %s6
  %s9 = scalar_select 0, %s8, %s6
  $region1: #{feed_forward.1} parent=0
    #allocation2 [shape = 'u8[32768]{0}', space=vmem, size = 0x8000, scoped, tag = 'input window, operand 1, single buffered']
    #allocation3 [shape = 's32[2]{0}', space=sflag, size = 0x8, scoped, tag = 'scoped memory for feed_forward.1']
    #allocation4 [shape = 'u8[32768]{0}', space=vmem, size = 0x8000, scoped, tag = 'input window, operand 3, single buffered']
    #allocation5 [shape = 's32[1]{0}', space=sflag, size = 0x4, scoped, tag = 'scoped memory for feed_forward.1']
    %10 = vsyncpa [#allocation3], 0
    %11 = vsyncpa [#allocation5], 0
    loop: start=0, step=1, limit=4
    $region2: #{feed_forward.1} parent=1 // loop_pre_header
      _
    $region3: #{feed_forward.1} parent=1 // loop_header
      %s13 = sphi 0, %s17
      %p14 = scmp.ge.s32.totalorder %s13, 4
      %s20 = sphi 0, %s32
      %s21 = sphi 0, %s28
      %s22 = sphi 0, %s20
      %s23 = sphi 0, %s21
      %s24 = sphi 0, %s22
      %s25 = sphi 0, %s23
      %s35 = sphi 0, %s37
      %s38 = sphi 0, %s35
      %s39 = sphi 0, %s38
      %s55 = sphi 0, %s39
      %s59 = sphi 0, %s59
      %s61 = sphi 0, %s59
      %s62 = sphi 0, %s61
      %s76 = sphi 0, %s62
      %s80 = sphi 0, %s80
      %s82 = sphi 0, %s80
      %s83 = sphi 0, %s82
      %s97 = sphi 0, %s83
      %s101 = sphi 0, %s101
      %s103 = sphi 0, %s101
      %s104 = sphi 0, %s103
      %s118 = sphi 0, %s104
      %s122 = sphi 0, %s122
      %s124 = sphi 0, %s122
      %s125 = sphi 0, %s124
      %s139 = sphi 0, %s125
      %s145 = sphi 0, %s147
      %s148 = sphi 0, %s145
      %s149 = sphi 0, %s148
      %s165 = sphi 0, %s149
    $region4: #{feed_forward.1} parent=1 // loop_header_branch
      %16 = sbr.rel (%p14) target = $region8
    $region5: #{feed_forward.1} parent=1 // loop_body
      %s18 = ssub.s32 %s13, 1
      %s19 = ssub.s32 %s13, 2
      %s26 = sadd.s32 1, %s21
      %p27 = scmp.ge.s32.totalorder %s26, 1
      %s28 = scalar_select %p27, 0, %s26
      %s29 = sadd.s32 1, %s20
      %s30 = scalar_select %p27, %s29, %s20
      %p31 = scmp.ge.s32.totalorder %s30, 2
      %s32 = scalar_select %p31, 0, %s30
      %s33 = ssub.s32 %s20, %s32
      %p34 = scmp.eq.s32.totalorder %s33, 0
      %s36 = sadd.s32 %s35, 1
      %s37 = scalar_select %p34, %s35, %s36
      %p40 = pneg %p34
      %p41 = scmp.eq.s32.totalorder %s13, 1
      %p42 = por %p40, %p41
      %p43 = scmp.ne.s32.totalorder %s35, %s38
      %p44 = scmp.eq.s32.totalorder %s13, 0
      %p45 = por %p43, %p44
      %p46 = scmp.ne.s32.totalorder %s35, %s38
      %p47 = scmp.eq.s32.totalorder %s18, 1
      %p48 = por %p46, %p47
      %p49 = scmp.ne.s32.totalorder %s38, %s39
      %p50 = scmp.eq.s32.totalorder %s18, 0
      %p51 = por %p49, %p50
      %p52 = scmp.ne.s32.totalorder %s38, %s39
      %p53 = scmp.eq.s32.totalorder %s19, 1
      %p54 = por %p52, %p53
      %p56 = scmp.ne.s32.totalorder %s39, %s55
      %p57 = scmp.eq.s32.totalorder %s19, 0
      %p58 = por %p56, %p57
      %s60 = sadd.s32 %s59, 1
      %p63 = scmp.eq.s32.totalorder %s13, 1
      %p64 = scmp.ne.s32.totalorder %s59, %s61
      %p65 = scmp.eq.s32.totalorder %s13, 0
      %p66 = por %p64, %p65
      %p67 = scmp.ne.s32.totalorder %s59, %s61
      %p68 = scmp.eq.s32.totalorder %s18, 1
      %p69 = por %p67, %p68
      %p70 = scmp.ne.s32.totalorder %s61, %s62
      %p71 = scmp.eq.s32.totalorder %s18, 0
      %p72 = por %p70, %p71
      %p73 = scmp.ne.s32.totalorder %s61, %s62
      %p74 = scmp.eq.s32.totalorder %s19, 1
      %p75 = por %p73, %p74
      %p77 = scmp.ne.s32.totalorder %s62, %s76
      %p78 = scmp.eq.s32.totalorder %s19, 0
      %p79 = por %p77, %p78
      %s81 = sadd.s32 %s80, 1
      %p84 = scmp.eq.s32.totalorder %s13, 1
      %p85 = scmp.ne.s32.totalorder %s80, %s82
      %p86 = scmp.eq.s32.totalorder %s13, 0
      %p87 = por %p85, %p86
      %p88 = scmp.ne.s32.totalorder %s80, %s82
      %p89 = scmp.eq.s32.totalorder %s18, 1
      %p90 = por %p88, %p89
      %p91 = scmp.ne.s32.totalorder %s82, %s83
      %p92 = scmp.eq.s32.totalorder %s18, 0
      %p93 = por %p91, %p92
      %p94 = scmp.ne.s32.totalorder %s82, %s83
      %p95 = scmp.eq.s32.totalorder %s19, 1
      %p96 = por %p94, %p95
      %p98 = scmp.ne.s32.totalorder %s83, %s97
      %p99 = scmp.eq.s32.totalorder %s19, 0
      %p100 = por %p98, %p99
      %s102 = sadd.s32 %s101, 1
      %p105 = scmp.eq.s32.totalorder %s13, 1
      %p106 = scmp.ne.s32.totalorder %s101, %s103
      %p107 = scmp.eq.s32.totalorder %s13, 0
      %p108 = por %p106, %p107
      %p109 = scmp.ne.s32.totalorder %s101, %s103
      %p110 = scmp.eq.s32.totalorder %s18, 1
      %p111 = por %p109, %p110
      %p112 = scmp.ne.s32.totalorder %s103, %s104
      %p113 = scmp.eq.s32.totalorder %s18, 0
      %p114 = por %p112, %p113
      %p115 = scmp.ne.s32.totalorder %s103, %s104
      %p116 = scmp.eq.s32.totalorder %s19, 1
      %p117 = por %p115, %p116
      %p119 = scmp.ne.s32.totalorder %s104, %s118
      %p120 = scmp.eq.s32.totalorder %s19, 0
      %p121 = por %p119, %p120
      %s123 = sadd.s32 %s122, 1
      %p126 = scmp.eq.s32.totalorder %s13, 1
      %p127 = scmp.ne.s32.totalorder %s122, %s124
      %p128 = scmp.eq.s32.totalorder %s13, 0
      %p129 = por %p127, %p128
      %p130 = scmp.ne.s32.totalorder %s122, %s124
      %p131 = scmp.eq.s32.totalorder %s18, 1
      %p132 = por %p130, %p131
      %p133 = scmp.ne.s32.totalorder %s124, %s125
      %p134 = scmp.eq.s32.totalorder %s18, 0
      %p135 = por %p133, %p134
      %p136 = scmp.ne.s32.totalorder %s124, %s125
      %p137 = scmp.eq.s32.totalorder %s19, 1
      %p138 = por %p136, %p137
      %p140 = scmp.ne.s32.totalorder %s125, %s139
      %p141 = scmp.eq.s32.totalorder %s19, 0
      %p142 = por %p140, %p141
      %s143 = ssub.s32 %s20, %s32
      %p144 = scmp.eq.s32.totalorder %s143, 0
      %s146 = sadd.s32 %s145, 1
      %s147 = scalar_select %p144, %s145, %s146
      %p150 = pneg %p144
      %p151 = scmp.eq.s32.totalorder %s13, 1
      %p152 = por %p150, %p151
      %p153 = scmp.ne.s32.totalorder %s145, %s148
      %p154 = scmp.eq.s32.totalorder %s13, 0
      %p155 = por %p153, %p154
      %p156 = scmp.ne.s32.totalorder %s145, %s148
      %p157 = scmp.eq.s32.totalorder %s18, 1
      %p158 = por %p156, %p157
      %p159 = scmp.ne.s32.totalorder %s148, %s149
      %p160 = scmp.eq.s32.totalorder %s18, 0
      %p161 = por %p159, %p160
      %p162 = scmp.ne.s32.totalorder %s148, %s149
      %p163 = scmp.eq.s32.totalorder %s19, 1
      %p164 = por %p162, %p163
      %p166 = scmp.ne.s32.totalorder %s149, %s165
      %p167 = scmp.eq.s32.totalorder %s19, 0
      %p168 = por %p166, %p167
      %p169 = scmp.le.s32.totalorder 1, %s13
      %p170 = scmp.lt.s32.totalorder %s13, 3
      %p171 = pnand %p169, %p170
      %p172 = pneg %p171
      // Predicated region
      $region9: #{feed_forward.1} parent=5 // pred_check
        _
      $region10: #{feed_forward.1} parent=5 // pred_check_branch
        %174 = sbr.rel (%p171) target = $region12
      $region11: #{feed_forward.1} parent=5 // pred_region
        %s175 = ssub.s32 %s13, 1
        // Predicated region
        $region13: #{feed_forward.1} parent=11 // pred_check
          %p176 = pneg %p72
        $region14: #{feed_forward.1} parent=11 // pred_check_branch
          %178 = sbr.rel (%p176) target = $region16
        $region15: #{feed_forward.1} parent=11 // pred_region
          %180 = vsyncadd [#allocation3], 0
          %s181 = sshll.u32 %s1, 4
          %s182 = int_to_ptr.hbm [resolvable:$true] %s181
          %s183 = sshll.u32 [#allocation2], 4
          %s184 = int_to_ptr.vmem [resolvable:$true] %s183
          %189 = dma.hbm_to_vmem [thread:$0]  %s182, 1024, %s184, [#allocation3], 64, 64, 4
        $region16: #{feed_forward.1} parent=11 // pred_fallthru
          _
        // Predicated region
        $region17: #{feed_forward.1} parent=11 // pred_check
          %p190 = pneg %p93
        $region18: #{feed_forward.1} parent=11 // pred_check_branch
          %192 = sbr.rel (%p190) target = $region20
        $region19: #{feed_forward.1} parent=11 // pred_region
          _
        $region20: #{feed_forward.1} parent=11 // pred_fallthru
          _
        // Predicated region
        $region21: #{feed_forward.1} parent=11 // pred_check
          %p193 = pneg %p114
        $region22: #{feed_forward.1} parent=11 // pred_check_branch
          %195 = sbr.rel (%p193) target = $region24
        $region23: #{feed_forward.1} parent=11 // pred_region
          %197 = vsyncadd [#allocation5], 0
          %s198 = sshll.u32 %s3, 4
          %s199 = int_to_ptr.hbm [resolvable:$true] %s198
          %s200 = sshll.u32 [#allocation4], 4
          %s201 = int_to_ptr.vmem [resolvable:$true] %s200
          %206 = dma.hbm_to_vmem [thread:$0]  %s199, 1024, %s201, [#allocation5], 64, 64, 4
        $region24: #{feed_forward.1} parent=11 // pred_fallthru
          _
        // Predicated region
        $region25: #{feed_forward.1} parent=11 // pred_check
          %p207 = pneg %p135
        $region26: #{feed_forward.1} parent=11 // pred_check_branch
          %209 = sbr.rel (%p207) target = $region28
        $region27: #{feed_forward.1} parent=11 // pred_region
          _
        $region28: #{feed_forward.1} parent=11 // pred_fallthru
          _
      $region12: #{feed_forward.1} parent=5 // pred_fallthru
        _
      %p210 = scmp.lt.s32.totalorder %s13, 2
      // Predicated region
      $region29: #{feed_forward.1} parent=5 // pred_check
        %p211 = pneg %p210
      $region30: #{feed_forward.1} parent=5 // pred_check_branch
        %213 = sbr.rel (%p211) target = $region32
      $region31: #{feed_forward.1} parent=5 // pred_region
        // Predicated region
        $region33: #{feed_forward.1} parent=31 // pred_check
          %p214 = pneg %p45
        $region34: #{feed_forward.1} parent=31 // pred_check_branch
          %216 = sbr.rel (%p214) target = $region36
        $region35: #{feed_forward.1} parent=31 // pred_region
          %p217 = scmp.lt.s32.totalorder %s20, 1
          %s218 = scalar_select %p217, %s20, 1
          %s219 = smul.addr %s218, 4
          %s220 = scalar_lea.vmem %s0, %s219
        $region36: #{feed_forward.1} parent=31 // pred_fallthru
          _
      $region32: #{feed_forward.1} parent=5 // pred_fallthru
        _
      %p221 = scmp.le.s32.totalorder 1, %s13
      %p222 = scmp.lt.s32.totalorder %s13, 3
      %p223 = pnand %p221, %p222
      %p224 = pneg %p223
      // Predicated region
      $region37: #{feed_forward.1} parent=5 // pred_check
        _
      $region38: #{feed_forward.1} parent=5 // pred_check_branch
        %226 = sbr.rel (%p223) target = $region40
      $region39: #{feed_forward.1} parent=5 // pred_region
        %s227 = ssub.s32 %s13, 1
        // Predicated region
        $region41: #{feed_forward.1} parent=39 // pred_check
          %p228 = pneg %p72
        $region42: #{feed_forward.1} parent=39 // pred_check_branch
          %230 = sbr.rel (%p228) target = $region44
        $region43: #{feed_forward.1} parent=39 // pred_region
          %232 = dma.done [#allocation3], 1024
        $region44: #{feed_forward.1} parent=39 // pred_fallthru
          _
        // Predicated region
        $region45: #{feed_forward.1} parent=39 // pred_check
          %p233 = pneg %p114
        $region46: #{feed_forward.1} parent=39 // pred_check_branch
          %235 = sbr.rel (%p233) target = $region48
        $region47: #{feed_forward.1} parent=39 // pred_region
          %237 = dma.done [#allocation5], 1024
        $region48: #{feed_forward.1} parent=39 // pred_fallthru
          _
        %p238 = scmp.lt.s32.totalorder %s22, 1
        %s239 = scalar_select %p238, %s22, 1
        %s240 = smul.addr %s239, 4
        %s241 = scalar_lea.vmem %s0, %s240
        %p242 = pneg %p51
        %p243 = pneg %p48
        %p244 = pneg %p72
        %p245 = pneg %p69
        %p246 = pneg %p93
        %p247 = pneg %p90
        %p248 = pneg %p114
        %p249 = pneg %p111
        %p250 = pneg %p135
        %p251 = pneg %p132
        %p252 = pneg %p161
        %p253 = pneg %p158
        %p254 = scmp.lt.s32.totalorder %s22, 1
        %s255 = scalar_select %p254, %s22, 1
        %s256 = smul.addr %s255, 8
        %s257 = scalar_lea.vmem %s5, %s256
        %p258 = scmp.lt.s32.totalorder %s22, 1
        %s259 = scalar_select %p258, %s22, 1
        %s260 = smul.addr %s259, 4
        %s261 = scalar_lea.vmem %s0, %s260
        %p262 = scmp.lt.s32.totalorder %s22, 1
        %s263 = scalar_select %p262, %s22, 1
        %s264 = smul.addr %s263, 8
        %s265 = scalar_lea.vmem %s5, %s264
        %s266 = smul.u32 %s23, 16
        %s267 = smul.addr %s266, 4
        %s268 = scalar_lea.vmem [#allocation2], %s267
        %v269 = vld [vmem:[%s268] sm:$0xf]
        %v270 = vld [vmem:[%s268 + $0x4] sm:$0xf]
        %v271 = vld [vmem:[%s268 + $0x8] sm:$0xf]
        %v272 = vld [vmem:[%s268 + $0xc] sm:$0xf]
        %v273 = vld [vmem:[%s268 + $0x10] sm:$0xf]
        %v274 = vld [vmem:[%s268 + $0x14] sm:$0xf]
        %v275 = vld [vmem:[%s268 + $0x18] sm:$0xf]
        %v276 = vld [vmem:[%s268 + $0x1c] sm:$0xf]
        %v277 = vld [vmem:[%s268 + $0x20] sm:$0xf]
        %v278 = vld [vmem:[%s268 + $0x24] sm:$0xf]
        %v279 = vld [vmem:[%s268 + $0x28] sm:$0xf]
        %v280 = vld [vmem:[%s268 + $0x2c] sm:$0xf]
        %v281 = vld [vmem:[%s268 + $0x30] sm:$0xf]
        %v282 = vld [vmem:[%s268 + $0x34] sm:$0xf]
        %v283 = vld [vmem:[%s268 + $0x38] sm:$0xf]
        %v284 = vld [vmem:[%s268 + $0x3c] sm:$0xf]
        %s285 = scalar_lea.vmem %s2, %s23
        %v286 = vld [vmem:[%s285] sm:$0x1]
        %s287 = smul.addr %s266, 4
        %s288 = scalar_lea.vmem [#allocation4], %s287
        %v289 = vld [vmem:[%s288] sm:$0xf]
        %v290 = vld [vmem:[%s288 + $0x4] sm:$0xf]
        %v291 = vld [vmem:[%s288 + $0x8] sm:$0xf]
        %v292 = vld [vmem:[%s288 + $0xc] sm:$0xf]
        %v293 = vld [vmem:[%s288 + $0x10] sm:$0xf]
        %v294 = vld [vmem:[%s288 + $0x14] sm:$0xf]
        %v295 = vld [vmem:[%s288 + $0x18] sm:$0xf]
        %v296 = vld [vmem:[%s288 + $0x1c] sm:$0xf]
        %v297 = vld [vmem:[%s288 + $0x20] sm:$0xf]
        %v298 = vld [vmem:[%s288 + $0x24] sm:$0xf]
        %v299 = vld [vmem:[%s288 + $0x28] sm:$0xf]
        %v300 = vld [vmem:[%s288 + $0x2c] sm:$0xf]
        %v301 = vld [vmem:[%s288 + $0x30] sm:$0xf]
        %v302 = vld [vmem:[%s288 + $0x34] sm:$0xf]
        %v303 = vld [vmem:[%s288 + $0x38] sm:$0xf]
        %v304 = vld [vmem:[%s288 + $0x3c] sm:$0xf]
        %v305 = vld [vmem:[%s261] sm:$0xf]
        %v307 = vperm.slane %v286, 0
        %v325 = vunpack.c.l.b16 %v269
        %v326 = vunpack.c.l.b16 %v270
        %v327 = vunpack.c.l.b16 %v271
        %v328 = vunpack.c.l.b16 %v272
        %v329 = vunpack.c.l.b16 %v273
        %v330 = vunpack.c.l.b16 %v274
        %v331 = vunpack.c.l.b16 %v275
        %v332 = vunpack.c.l.b16 %v276
        %v333 = vunpack.c.l.b16 %v277
        %v334 = vunpack.c.l.b16 %v278
        %v335 = vunpack.c.l.b16 %v279
        %v336 = vunpack.c.l.b16 %v280
        %v337 = vunpack.c.l.b16 %v281
        %v338 = vunpack.c.l.b16 %v282
        %v339 = vunpack.c.l.b16 %v283
        %v340 = vunpack.c.l.b16 %v284
        %v341 = vpack.c.b16 %v326, %v325
        %v342 = vpack.c.b16 %v328, %v327
        %v343 = vpack.c.b16 %v330, %v329
        %v344 = vpack.c.b16 %v332, %v331
        %v345 = vpack.c.b16 %v334, %v333
        %v346 = vpack.c.b16 %v336, %v335
        %v347 = vpack.c.b16 %v338, %v337
        %v348 = vpack.c.b16 %v340, %v339
        %357 = vmatpush.bf16.msra.mxu0 %v348
        %358 = vmatpush.bf16.msra.mxu0 %v347
        %359 = vmatpush.bf16.msra.mxu0 %v346
        %360 = vmatpush.bf16.msra.mxu0 %v345
        %361 = vmatpush.bf16.msra.mxu0 %v344
        %362 = vmatpush.bf16.msra.mxu0 %v343
        %363 = vmatpush.bf16.msra.mxu0 %v342
        %364 = vmatpush.bf16.msra.mxu0 %v341
        %365 = vmatmul.bf16.gmra.mxu0 %v305
        %v366 = vpop.f32.mrf.mxu0
        %v367 = vadd.f32 %v307, %v366
        %v368 = vpop.f32.mrf.mxu0
        %369 = vdwg.mxu0
        %v370 = vmax.f32 %v367, 0.0
        %v371 = vpack.c.bf16 %v370, %v370
        %v388 = vunpack.c.l.b16 %v289
        %v389 = vunpack.c.l.b16 %v290
        %v390 = vunpack.c.l.b16 %v291
        %v391 = vunpack.c.l.b16 %v292
        %v392 = vunpack.c.l.b16 %v293
        %v393 = vunpack.c.l.b16 %v294
        %v394 = vunpack.c.l.b16 %v295
        %v395 = vunpack.c.l.b16 %v296
        %v396 = vunpack.c.l.b16 %v297
        %v397 = vunpack.c.l.b16 %v298
        %v398 = vunpack.c.l.b16 %v299
        %v399 = vunpack.c.l.b16 %v300
        %v400 = vunpack.c.l.b16 %v301
        %v401 = vunpack.c.l.b16 %v302
        %v402 = vunpack.c.l.b16 %v303
        %v403 = vunpack.c.l.b16 %v304
        %v404 = vpack.c.b16 %v389, %v388
        %v405 = vpack.c.b16 %v391, %v390
        %v406 = vpack.c.b16 %v393, %v392
        %v407 = vpack.c.b16 %v395, %v394
        %v408 = vpack.c.b16 %v397, %v396
        %v409 = vpack.c.b16 %v399, %v398
        %v410 = vpack.c.b16 %v401, %v400
        %v411 = vpack.c.b16 %v403, %v402
        %420 = vmatpush.bf16.msra.mxu0 %v411
        %421 = vmatpush.bf16.msra.mxu0 %v410
        %422 = vmatpush.bf16.msra.mxu0 %v409
        %423 = vmatpush.bf16.msra.mxu0 %v408
        %424 = vmatpush.bf16.msra.mxu0 %v407
        %425 = vmatpush.bf16.msra.mxu0 %v406
        %426 = vmatpush.bf16.msra.mxu0 %v405
        %427 = vmatpush.bf16.msra.mxu0 %v404
        %428 = vmatmul.bf16.gmra.mxu0 %v371
        %v429 = vpop.f32.mrf.mxu0
        %v430 = vadd.f32 0.0, %v429
        %v431 = vpop.f32.mrf.mxu0
        %432 = vdwg.mxu0
        %p433 = scmp.eq.s32.totalorder %s23, 0
        // Predicated region
        $region49: #{feed_forward.1} parent=39 // pred_check
          %p434 = pneg %p433
        $region50: #{feed_forward.1} parent=39 // pred_check_branch
          %436 = sbr.rel (%p434) target = $region52
        $region51: #{feed_forward.1} parent=39 // pred_region
          %v437 = vld [vmem:[%s4] sm:$0x1]
          %v439 = vperm.slane %v437, 0
          %v441 = vadd.f32 %v430, %v439
          %442 = vst [vmem:[%s265] sm:$0xff] %v441
        $region52: #{feed_forward.1} parent=39 // pred_fallthru
          _
        %p443 = scmp.ne.s32.totalorder %s23, 0
        // Predicated region
        $region53: #{feed_forward.1} parent=39 // pred_check
          %p444 = pneg %p443
        $region54: #{feed_forward.1} parent=39 // pred_check_branch
          %446 = sbr.rel (%p444) target = $region56
        $region55: #{feed_forward.1} parent=39 // pred_region
          %v447 = vld [vmem:[%s265] sm:$0xff]
          %v448 = vadd.f32 %v447, %v430
          %449 = vst [vmem:[%s265] sm:$0xff] %v448
        $region56: #{feed_forward.1} parent=39 // pred_fallthru
          _
        %p450 = scmp.lt.s32.totalorder %s22, 1
        %s451 = scalar_select %p450, %s22, 1
        %s452 = smul.addr %s451, 8
        %s453 = scalar_lea.vmem %s5, %s452
        // Predicated region
        $region57: #{feed_forward.1} parent=39 // pred_check
          %p454 = pneg %p158
        $region58: #{feed_forward.1} parent=39 // pred_check_branch
          %456 = sbr.rel (%p454) target = $region60
        $region59: #{feed_forward.1} parent=39 // pred_region
          _
        $region60: #{feed_forward.1} parent=39 // pred_fallthru
          _
      $region40: #{feed_forward.1} parent=5 // pred_fallthru
        _
      %p457 = scmp.le.s32.totalorder 2, %s13
      // Predicated region
      $region61: #{feed_forward.1} parent=5 // pred_check
        %p458 = pneg %p457
      $region62: #{feed_forward.1} parent=5 // pred_check_branch
        %460 = sbr.rel (%p458) target = $region64
      $region63: #{feed_forward.1} parent=5 // pred_region
        %s461 = ssub.s32 %s13, 2
        // Predicated region
        $region65: #{feed_forward.1} parent=63 // pred_check
          %p462 = pneg %p164
        $region66: #{feed_forward.1} parent=63 // pred_check_branch
          %464 = sbr.rel (%p462) target = $region68
        $region67: #{feed_forward.1} parent=63 // pred_region
          %p465 = scmp.lt.s32.totalorder %s24, 1
          %s466 = scalar_select %p465, %s24, 1
          %s467 = smul.addr %s466, 8
          %s468 = scalar_lea.vmem %s5, %s467
        $region68: #{feed_forward.1} parent=63 // pred_fallthru
          _
      $region64: #{feed_forward.1} parent=5 // pred_fallthru
        _
    $region6: #{feed_forward.1} parent=1 // loop_footer
      %s17 = sadd.s32 1, %s13
    $region7: #{feed_forward.1} parent=1 // loop_footer_branch
      %12 = sbr.rel target = $region3
    $region8: #{feed_forward.1} parent=1 // loop_exit
      _
    %469 = vsyncpa [#allocation3], 1
    %s470 = scalar_lea.sflag [#allocation3], 1
    %471 = vsyncpa %s470, 1
    %472 = vsyncpa [#allocation5], 1

</llo_original>
